<compile_context>
chip_gen: v5e
topology: v5e:2x2
jax: 0.10.0
libtpu: 0.0.40
codegen_flags: <defaults>
</compile_context>

<pallas_src>
import jax
import jax.numpy as jnp
from jax.experimental import pallas as pl
from jax.experimental.pallas import tpu as pltpu

_LANE = 128
_SUBLANE = 8


def _round_up(n, m):
    return ((n + m - 1) // m) * m


def _cdiv(a, b):
    return -(-a // b)


def _critic_mlp_kernel(x_ref,
                       w1_ref, b1_ref,
                       w2_ref, b2_ref,
                       w3_ref, b3_ref,
                       w4_ref, b4_ref,
                       o_ref):
    """Full probabilistic-critic MLP forward for one batch tile.

    Matmuls run in the weights' dtype (f32 or bf16) with f32 accumulation on
    the MXU; bias-add / ReLU always run in f32 on the VPU.
    """
    wdt = w1_ref.dtype

    h = x_ref[...]
    h = jnp.dot(h, w1_ref[...], preferred_element_type=jnp.float32) + b1_ref[...]
    h = jnp.maximum(h, 0.0).astype(wdt)

    h = jnp.dot(h, w2_ref[...], preferred_element_type=jnp.float32) + b2_ref[...]
    h = jnp.maximum(h, 0.0).astype(wdt)

    h = jnp.dot(h, w3_ref[...], preferred_element_type=jnp.float32) + b3_ref[...]
    h = jnp.maximum(h, 0.0).astype(wdt)

    y = jnp.dot(h, w4_ref[...], preferred_element_type=jnp.float32) + b4_ref[...]
    o_ref[...] = y.astype(o_ref.dtype)


def _choose_batch_tile(batch):
    """Pick a sublane-aligned batch tile.

    RL-sized batches (<=256) use a single tile: the kernel is weight-DMA /
    launch bound there and extra grid steps only add per-step overhead.
    Larger batches use ~256-row tiles with at least two grid steps so the
    x/out DMAs pipeline against the 256x256 matmuls and the parallel batch
    axis can be sharded across both TensorCores on v7x.
    """
    br = _round_up(batch, _SUBLANE)
    if br <= 256:
        return br
    n_tiles = max(2, _cdiv(br, 256))
    return _round_up(_cdiv(br, n_tiles), _SUBLANE)


def critic_net_probabilistic_forward(x, params, *, batch_tile=None,
                                     compute_dtype=None):
    """Pallas forward. x: (B, dim_state + dim_act). Returns (B, 2).

    compute_dtype=jnp.bfloat16 runs the matmuls in bf16 (f32 accumulation);
    default None keeps full f32 (matches the PyTorch module bit-for-tolerance).
    """
    orig_dtype = x.dtype
    B, d_in = x.shape
    (w1, b1), (w2, b2), (w3, b3), (w4, b4) = params
    width = w1.shape[1]
    d_out = w4.shape[1]

    # --- batch tiling (tb multiple of 8; pad batch to a tile multiple) -----
    if batch_tile is None:
        tb = _choose_batch_tile(B)
    else:
        tb = max(_SUBLANE, _round_up(int(batch_tile), _SUBLANE))
    b_pad = _round_up(max(B, tb), tb)
    if b_pad != B:
        x = jnp.pad(x, ((0, b_pad - B), (0, 0)))

    # --- lane-dense output head: pad the 2-wide head to 128 lanes ----------
    d_out_p = _round_up(d_out, _LANE)
    w4p = jnp.pad(w4, ((0, 0), (0, d_out_p - d_out)))
    b4p = jnp.pad(b4, ((0, 0), (0, d_out_p - d_out)))

    # --- optional bf16 compute (MXU-native on v5e/v6e/v7x) -----------------
    if compute_dtype is not None:
        x = x.astype(compute_dtype)
        w1, w2, w3, w4p = (w.astype(compute_dtype) for w in (w1, w2, w3, w4p))
    # Biases stay f32: bias-add + ReLU run in f32 (f32 MXU accumulation).
    b1, b2, b3, b4p = (b.astype(jnp.float32) for b in (b1, b2, b3, b4p))

    grid = (b_pad // tb,)

    def _resident(shape):
        # Constant index_map -> block stays resident in VMEM and is only
        # DMA'd once across the whole grid (no re-fetch); double-buffer
        # overhead for these small weights is negligible (<1 MB).
        return pl.BlockSpec(shape, lambda i: (0,) * len(shape))

    wbytes = sum(int(a.size) * a.dtype.itemsize
                 for a in (w1, b1, w2, b2, w3, b3, w4p, b4p))
    cost = pl.CostEstimate(
        flops=2 * b_pad * (d_in * width + 2 * width * width + width * d_out_p),
        transcendentals=0,
        bytes_accessed=int(x.size) * x.dtype.itemsize + wbytes
        + b_pad * d_out_p * jnp.dtype(orig_dtype).itemsize,
    )

    out = pl.pallas_call(
        _critic_mlp_kernel,
        out_shape=jax.ShapeDtypeStruct((b_pad, d_out_p), orig_dtype),
        grid_spec=pltpu.PrefetchScalarGridSpec(
            num_scalar_prefetch=0,
            grid=grid,
            in_specs=[
                pl.BlockSpec((tb, d_in), lambda i: (i, 0)),     # x tile
                _resident((d_in, width)), _resident((1, width)),    # layer 1
                _resident((width, width)), _resident((1, width)),   # layer 2
                _resident((width, width)), _resident((1, width)),   # layer 3
                _resident((width, d_out_p)), _resident((1, d_out_p)),  # head
            ],
            out_specs=pl.BlockSpec((tb, d_out_p), lambda i: (i, 0)),
        ),
        compiler_params=pltpu.CompilerParams(
            dimension_semantics=("parallel",)),
        cost_estimate=cost,
    )(x, w1, b1, w2, b2, w3, b3, w4p, b4p)

    # Strip batch padding and the padded output lanes.
    return out[:B, :d_out]


def init_params(key, dim_in, dim_out=2, depth=3, width=256, dtype=jnp.float32):
    """PyTorch-Linear-style init: U(-1/sqrt(fan_in), 1/sqrt(fan_in))."""
    dims = [dim_in] + [width] * depth + [dim_out]
    params = []
    for fan_in, fan_out in zip(dims[:-1], dims[1:]):
        key, kw, kb = jax.random.split(key, 3)
        bound = 1.0 / jnp.sqrt(jnp.asarray(fan_in, dtype))
        w = jax.random.uniform(kw, (fan_in, fan_out), dtype, -bound, bound)
        b = jax.random.uniform(kb, (1, fan_out), dtype, -bound, bound)
        params.append((w, b))
    return params


def reference_forward(x, params):
    """Plain-JAX f32 reference of the same MLP."""
    (w1, b1), (w2, b2), (w3, b3), (w4, b4) = params
    h = jnp.maximum(x @ w1 + b1, 0.0)
    h = jnp.maximum(h @ w2 + b2, 0.0)
    h = jnp.maximum(h @ w3 + b3, 0.0)
    return h @ w4 + b4


if __name__ == "__main__":
    # Module-consistent small shapes: observation dim 12, action dim 4.
    dim_state, dim_act = 12, 4
    depth, width = 3, 256
    d_in = dim_state + dim_act

    key = jax.random.PRNGKey(0)
    k_x, k_p, k_x2 = jax.random.split(key, 3)
    params = init_params(k_p, d_in, dim_out=2, depth=depth, width=width)

    # 1) f32 path, RL-sized batch (single tile).
    batch = 8
    x = jax.random.normal(k_x, (batch, d_in), dtype=jnp.float32)
    y = jax.block_until_ready(critic_net_probabilistic_forward(x, params))
    y_ref = reference_forward(x, params)
    assert y.shape == (batch, 2)
    assert jnp.allclose(y, y_ref, atol=1e-5, rtol=1e-5)

    # 2) bf16 compute path, non-tile-aligned batch (exercises batch padding,
    #    a multi-step grid, and the lane-dense padded output head).
    batch2 = 20
    x2 = jax.random.normal(k_x2, (batch2, d_in), dtype=jnp.float32)
    y2 = jax.block_until_ready(
        critic_net_probabilistic_forward(x2, params, batch_tile=8,
                                         compute_dtype=jnp.bfloat16))
    y2_ref = reference_forward(x2, params)
    assert y2.shape == (batch2, 2)
    assert jnp.allclose(y2, y2_ref, atol=5e-2, rtol=1e-1)

    print("KERNEL_OK")
</pallas_src>

<mosaic_0001>
module attributes {stable_mosaic.version = 11 : i64} {
  func.func @_critic_mlp_kernel(%arg0: i32, %arg1: memref<8x16xf32, #tpu.memory_space<vmem>>, %arg2: memref<16x256xf32, #tpu.memory_space<vmem>>, %arg3: memref<1x256xf32, #tpu.memory_space<vmem>>, %arg4: memref<256x256xf32, #tpu.memory_space<vmem>>, %arg5: memref<1x256xf32, #tpu.memory_space<vmem>>, %arg6: memref<256x256xf32, #tpu.memory_space<vmem>>, %arg7: memref<1x256xf32, #tpu.memory_space<vmem>>, %arg8: memref<256x128xf32, #tpu.memory_space<vmem>>, %arg9: memref<1x128xf32, #tpu.memory_space<vmem>>, %arg10: memref<8x128xf32, #tpu.memory_space<vmem>>) attributes {dimension_semantics = [#tpu.dimension_semantics<parallel>], iteration_bounds = array<i64: 1>, scalar_prefetch = 0 : i64, scratch_operands = 0 : i64, tpu.core_type = #tpu.core_type<tc>, window_params = [{transform_indices = @transform_0, window_bounds = array<i64: 8, 16>}, {pipeline_mode = #tpu.pipeline_mode<synchronous>, transform_indices = @transform_1, window_bounds = array<i64: 16, 256>}, {pipeline_mode = #tpu.pipeline_mode<synchronous>, transform_indices = @transform_2, window_bounds = array<i64: 1, 256>}, {pipeline_mode = #tpu.pipeline_mode<synchronous>, transform_indices = @transform_3, window_bounds = array<i64: 256, 256>}, {pipeline_mode = #tpu.pipeline_mode<synchronous>, transform_indices = @transform_4, window_bounds = array<i64: 1, 256>}, {pipeline_mode = #tpu.pipeline_mode<synchronous>, transform_indices = @transform_5, window_bounds = array<i64: 256, 256>}, {pipeline_mode = #tpu.pipeline_mode<synchronous>, transform_indices = @transform_6, window_bounds = array<i64: 1, 256>}, {pipeline_mode = #tpu.pipeline_mode<synchronous>, transform_indices = @transform_7, window_bounds = array<i64: 256, 128>}, {pipeline_mode = #tpu.pipeline_mode<synchronous>, transform_indices = @transform_8, window_bounds = array<i64: 1, 128>}, {transform_indices = @transform_9, window_bounds = array<i64: 8, 128>}]} {
    %c0 = arith.constant 0 : index
    %c0_0 = arith.constant 0 : index
    %0 = vector.load %arg1[%c0, %c0_0] : memref<8x16xf32, #tpu.memory_space<vmem>>, vector<8x16xf32>
    %c0_1 = arith.constant 0 : index
    %c0_2 = arith.constant 0 : index
    %1 = vector.load %arg2[%c0_1, %c0_2] : memref<16x256xf32, #tpu.memory_space<vmem>>, vector<16x256xf32>
    %cst = arith.constant dense<0.000000e+00> : vector<8x256xf32>
    %2 = tpu.matmul %0, %1, %cst {dimension_numbers = #tpu.dot_dimension_numbers<[1], [0], [0], [1], [0, 0, 1, 1], [], []>} : vector<8x16xf32>, vector<16x256xf32>, vector<8x256xf32> -> vector<8x256xf32>
    %c0_3 = arith.constant 0 : index
    %c0_4 = arith.constant 0 : index
    %3 = vector.load %arg3[%c0_3, %c0_4] : memref<1x256xf32, #tpu.memory_space<vmem>>, vector<1x256xf32>
    %4 = vector.broadcast %3 : vector<1x256xf32> to vector<8x256xf32>
    %5 = arith.addf %2, %4 : vector<8x256xf32>
    %cst_5 = arith.constant 0.000000e+00 : f32
    %6 = vector.broadcast %cst_5 : f32 to vector<8x256xf32>
    %7 = arith.maximumf %5, %6 : vector<8x256xf32>
    %c0_6 = arith.constant 0 : index
    %c0_7 = arith.constant 0 : index
    %8 = vector.load %arg4[%c0_6, %c0_7] : memref<256x256xf32, #tpu.memory_space<vmem>>, vector<256x256xf32>
    %cst_8 = arith.constant dense<0.000000e+00> : vector<8x256xf32>
    %9 = tpu.matmul %7, %8, %cst_8 {dimension_numbers = #tpu.dot_dimension_numbers<[1], [0], [0], [1], [0, 0, 1, 1], [], []>} : vector<8x256xf32>, vector<256x256xf32>, vector<8x256xf32> -> vector<8x256xf32>
    %c0_9 = arith.constant 0 : index
    %c0_10 = arith.constant 0 : index
    %10 = vector.load %arg5[%c0_9, %c0_10] : memref<1x256xf32, #tpu.memory_space<vmem>>, vector<1x256xf32>
    %11 = vector.broadcast %10 : vector<1x256xf32> to vector<8x256xf32>
    %12 = arith.addf %9, %11 : vector<8x256xf32>
    %cst_11 = arith.constant 0.000000e+00 : f32
    %13 = vector.broadcast %cst_11 : f32 to vector<8x256xf32>
    %14 = arith.maximumf %12, %13 : vector<8x256xf32>
    %c0_12 = arith.constant 0 : index
    %c0_13 = arith.constant 0 : index
    %15 = vector.load %arg6[%c0_12, %c0_13] : memref<256x256xf32, #tpu.memory_space<vmem>>, vector<256x256xf32>
    %cst_14 = arith.constant dense<0.000000e+00> : vector<8x256xf32>
    %16 = tpu.matmul %14, %15, %cst_14 {dimension_numbers = #tpu.dot_dimension_numbers<[1], [0], [0], [1], [0, 0, 1, 1], [], []>} : vector<8x256xf32>, vector<256x256xf32>, vector<8x256xf32> -> vector<8x256xf32>
    %c0_15 = arith.constant 0 : index
    %c0_16 = arith.constant 0 : index
    %17 = vector.load %arg7[%c0_15, %c0_16] : memref<1x256xf32, #tpu.memory_space<vmem>>, vector<1x256xf32>
    %18 = vector.broadcast %17 : vector<1x256xf32> to vector<8x256xf32>
    %19 = arith.addf %16, %18 : vector<8x256xf32>
    %cst_17 = arith.constant 0.000000e+00 : f32
    %20 = vector.broadcast %cst_17 : f32 to vector<8x256xf32>
    %21 = arith.maximumf %19, %20 : vector<8x256xf32>
    %c0_18 = arith.constant 0 : index
    %c0_19 = arith.constant 0 : index
    %22 = vector.load %arg8[%c0_18, %c0_19] : memref<256x128xf32, #tpu.memory_space<vmem>>, vector<256x128xf32>
    %cst_20 = arith.constant dense<0.000000e+00> : vector<8x128xf32>
    %23 = tpu.matmul %21, %22, %cst_20 {dimension_numbers = #tpu.dot_dimension_numbers<[1], [0], [0], [1], [0, 0, 1, 1], [], []>} : vector<8x256xf32>, vector<256x128xf32>, vector<8x128xf32> -> vector<8x128xf32>
    %c0_21 = arith.constant 0 : index
    %c0_22 = arith.constant 0 : index
    %24 = vector.load %arg9[%c0_21, %c0_22] : memref<1x128xf32, #tpu.memory_space<vmem>>, vector<1x128xf32>
    %25 = vector.broadcast %24 : vector<1x128xf32> to vector<8x128xf32>
    %26 = arith.addf %23, %25 : vector<8x128xf32>
    %c0_23 = arith.constant 0 : index
    %c0_24 = arith.constant 0 : index
    %27 = vector.load %arg10[%c0_23, %c0_24] : memref<8x128xf32, #tpu.memory_space<vmem>>, vector<8x128xf32>
    tpu.vector_store %arg10[%c0_23, %c0_24], %26 {strides = array<i32>} : memref<8x128xf32, #tpu.memory_space<vmem>>, vector<8x128xf32>,
    return
  }
  func.func @transform_0(%arg0: i32) -> (i32, i32) {
    %c0_i32 = arith.constant 0 : i32
    %c0_i32_0 = arith.constant 0 : i32
    return %arg0, %c0_i32 : i32, i32
  }
  func.func @transform_1(%arg0: i32) -> (i32, i32) {
    %c0_i32 = arith.constant 0 : i32
    %c0_i32_0 = arith.constant 0 : i32
    %c0_i32_1 = arith.constant 0 : i32
    return %c0_i32, %c0_i32_0 : i32, i32
  }
  func.func @transform_2(%arg0: i32) -> (i32, i32) {
    %c0_i32 = arith.constant 0 : i32
    %c0_i32_0 = arith.constant 0 : i32
    %c0_i32_1 = arith.constant 0 : i32
    return %c0_i32, %c0_i32_0 : i32, i32
  }
  func.func @transform_3(%arg0: i32) -> (i32, i32) {
    %c0_i32 = arith.constant 0 : i32
    %c0_i32_0 = arith.constant 0 : i32
    %c0_i32_1 = arith.constant 0 : i32
    return %c0_i32, %c0_i32_0 : i32, i32
  }
  func.func @transform_4(%arg0: i32) -> (i32, i32) {
    %c0_i32 = arith.constant 0 : i32
    %c0_i32_0 = arith.constant 0 : i32
    %c0_i32_1 = arith.constant 0 : i32
    return %c0_i32, %c0_i32_0 : i32, i32
  }
  func.func @transform_5(%arg0: i32) -> (i32, i32) {
    %c0_i32 = arith.constant 0 : i32
    %c0_i32_0 = arith.constant 0 : i32
    %c0_i32_1 = arith.constant 0 : i32
    return %c0_i32, %c0_i32_0 : i32, i32
  }
  func.func @transform_6(%arg0: i32) -> (i32, i32) {
    %c0_i32 = arith.constant 0 : i32
    %c0_i32_0 = arith.constant 0 : i32
    %c0_i32_1 = arith.constant 0 : i32
    return %c0_i32, %c0_i32_0 : i32, i32
  }
  func.func @transform_7(%arg0: i32) -> (i32, i32) {
    %c0_i32 = arith.constant 0 : i32
    %c0_i32_0 = arith.constant 0 : i32
    %c0_i32_1 = arith.constant 0 : i32
    return %c0_i32, %c0_i32_0 : i32, i32
  }
  func.func @transform_8(%arg0: i32) -> (i32, i32) {
    %c0_i32 = arith.constant 0 : i32
    %c0_i32_0 = arith.constant 0 : i32
    %c0_i32_1 = arith.constant 0 : i32
    return %c0_i32, %c0_i32_0 : i32, i32
  }
  func.func @transform_9(%arg0: i32) -> (i32, i32) {
    %c0_i32 = arith.constant 0 : i32
    %c0_i32_0 = arith.constant 0 : i32
    return %arg0, %c0_i32 : i32, i32
  }
}

</mosaic_0001>

<llo_original>
// kernel: tpu_custom_call.1
$region0: #{tpu_custom_call.1}
  #allocation0 [shape = 'u32[]', space=smem, size = 0x4, offset = 0x4, fixed_abs, tag = 'smem constant byte address 0x4 - core index']
  #allocation1 [shape = 'u32[72,128]{1,0:T(1,128)}', space=vmem, size = 0x9000, scoped, tag = 'internal scratch']
  %s0 = inlined_call_operand.hbm [shape: f32[8,16], index: 0, kind: input, shape index: {}]
  %s1 = inlined_call_operand.hbm [shape: f32[16,256], index: 1, kind: input, shape index: {}]
  %s2 = inlined_call_operand.hbm [shape: f32[1,256], index: 2, kind: input, shape index: {}]
  %s3 = inlined_call_operand.hbm [shape: f32[256,256], index: 3, kind: input, shape index: {}]
  %s4 = inlined_call_operand.vmem [shape: f32[1,256], index: 4, kind: input, shape index: {}]
  %s5 = inlined_call_operand.hbm [shape: f32[256,256], index: 5, kind: input, shape index: {}]
  %s6 = inlined_call_operand.vmem [shape: f32[1,256], index: 6, kind: input, shape index: {}]
  %s7 = inlined_call_operand.hbm [shape: f32[256,128], index: 7, kind: input, shape index: {}]
  %s8 = inlined_call_operand.vmem [shape: f32[1,128], index: 8, kind: input, shape index: {}]
  %s9 = inlined_call_operand.hbm [shape: f32[8,128], index: 9, kind: output, shape index: {}]
  %s10 = sld [smem:[#allocation0]]
  $region70: #{tpu_custom_call.1} parent=0
    _
  %s12 = ssub.s32 1, %s10
  %s13 = scalar_select 0, %s12, %s10
  $region1: #{tpu_custom_call.1} parent=0
    #allocation2 [shape = 'u8[4096]{0}', space=vmem, size = 0x1000, scoped, tag = 'input window, operand 0, single buffered']
    #allocation3 [shape = 's32[1]{0}', space=sflag, size = 0x4, scoped, tag = 'scoped memory for tpu_custom_call.1']
    #allocation4 [shape = 's32[1]{0}', space=sflag, size = 0x4, scoped, tag = 'scoped memory for tpu_custom_call.1']
    #allocation5 [shape = 'u8[16384]{0}', space=vmem, size = 0x4000, scoped, tag = 'input window, operand 1, single buffered']
    #allocation6 [shape = 's32[1]{0}', space=sflag, size = 0x4, scoped, tag = 'scoped memory for tpu_custom_call.1']
    #allocation7 [shape = 'u8[1024]{0}', space=vmem, size = 0x400, scoped, tag = 'input window, operand 2, single buffered']
    #allocation8 [shape = 'u8[262144]{0}', space=vmem, size = 0x40000, scoped, tag = 'input window, operand 3, single buffered']
    #allocation9 [shape = 's32[1]{0}', space=sflag, size = 0x4, scoped, tag = 'scoped memory for tpu_custom_call.1']
    #allocation10 [shape = 'u8[262144]{0}', space=vmem, size = 0x40000, scoped, tag = 'input window, operand 5, single buffered']
    #allocation11 [shape = 'u8[131072]{0}', space=vmem, size = 0x20000, scoped, tag = 'input window, operand 7, single buffered']
    #allocation12 [shape = 's32[1]{0}', space=sflag, size = 0x4, scoped, tag = 'scoped memory for tpu_custom_call.1']
    #allocation13 [shape = 'u8[4096]{0}', space=vmem, size = 0x1000, scoped, tag = 'output window, operand 0, single buffered']
    %14 = vsyncpa [#allocation3], 0
    %15 = vsyncpa [#allocation6], 0
    %16 = vsyncpa [#allocation9], 0
    %17 = vsyncpa [#allocation12], 0
    %18 = vsyncpa [#allocation4], 0
    // Predicated region
    $region2: #{tpu_custom_call.1} parent=1 // pred_check
      _
    $region3: #{tpu_custom_call.1} parent=1 // pred_check_branch
      %20 = sbr.rel (0) target = $region5
    $region4: #{tpu_custom_call.1} parent=1 // pred_region
      %22 = vsyncadd [#allocation3], 0
      %s24 = sshll.u32 %s0, 4
      %s25 = int_to_ptr.hbm [resolvable:$true] %s24
      %s26 = sshll.u32 [#allocation2], 4
      %s27 = int_to_ptr.vmem [resolvable:$true] %s26
      %29 = dma.hbm_to_vmem [thread:$0]  %s25, 128, %s27, [#allocation3]
    $region5: #{tpu_custom_call.1} parent=1 // pred_fallthru
      _
    // Predicated region
    $region6: #{tpu_custom_call.1} parent=1 // pred_check
      _
    $region7: #{tpu_custom_call.1} parent=1 // pred_check_branch
      %31 = sbr.rel (0) target = $region9
    $region8: #{tpu_custom_call.1} parent=1 // pred_region
      %33 = vsyncadd [#allocation6], 0
      %s34 = sshll.u32 %s1, 4
      %s35 = int_to_ptr.hbm [resolvable:$true] %s34
      %s36 = sshll.u32 [#allocation5], 4
      %s37 = int_to_ptr.vmem [resolvable:$true] %s36
      %42 = dma.hbm_to_vmem [thread:$0]  %s35, 512, %s37, [#allocation6], 256, 256, 16
    $region9: #{tpu_custom_call.1} parent=1 // pred_fallthru
      _
    // Predicated region
    $region10: #{tpu_custom_call.1} parent=1 // pred_check
      _
    $region11: #{tpu_custom_call.1} parent=1 // pred_check_branch
      %44 = sbr.rel (0) target = $region13
    $region12: #{tpu_custom_call.1} parent=1 // pred_region
      %46 = vsyncadd [#allocation6], 0
      %s48 = sshll.u32 %s2, 4
      %s49 = int_to_ptr.hbm [resolvable:$true] %s48
      %s50 = sshll.u32 [#allocation7], 4
      %s51 = int_to_ptr.vmem [resolvable:$true] %s50
      %53 = dma.hbm_to_vmem [thread:$0]  %s49, 32, %s51, [#allocation6]
    $region13: #{tpu_custom_call.1} parent=1 // pred_fallthru
      _
    // Predicated region
    $region14: #{tpu_custom_call.1} parent=1 // pred_check
      _
    $region15: #{tpu_custom_call.1} parent=1 // pred_check_branch
      %55 = sbr.rel (0) target = $region17
    $region16: #{tpu_custom_call.1} parent=1 // pred_region
      %57 = vsyncadd [#allocation9], 0
      %s58 = sshll.u32 %s3, 4
      %s59 = int_to_ptr.hbm [resolvable:$true] %s58
      %s60 = sshll.u32 [#allocation8], 4
      %s61 = int_to_ptr.vmem [resolvable:$true] %s60
      %66 = dma.hbm_to_vmem [thread:$0]  %s59, 8192, %s61, [#allocation9], 256, 256, 16
    $region17: #{tpu_custom_call.1} parent=1 // pred_fallthru
      _
    // Predicated region
    $region18: #{tpu_custom_call.1} parent=1 // pred_check
      _
    $region19: #{tpu_custom_call.1} parent=1 // pred_check_branch
      %68 = sbr.rel (0) target = $region21
    $region20: #{tpu_custom_call.1} parent=1 // pred_region
      _
    $region21: #{tpu_custom_call.1} parent=1 // pred_fallthru
      _
    // Predicated region
    $region22: #{tpu_custom_call.1} parent=1 // pred_check
      _
    $region23: #{tpu_custom_call.1} parent=1 // pred_check_branch
      %70 = sbr.rel (0) target = $region25
    $region24: #{tpu_custom_call.1} parent=1 // pred_region
      %72 = vsyncadd [#allocation9], 0
      %s73 = sshll.u32 %s5, 4
      %s74 = int_to_ptr.hbm [resolvable:$true] %s73
      %s75 = sshll.u32 [#allocation10], 4
      %s76 = int_to_ptr.vmem [resolvable:$true] %s75
      %81 = dma.hbm_to_vmem [thread:$0]  %s74, 8192, %s76, [#allocation9], 256, 256, 16
    $region25: #{tpu_custom_call.1} parent=1 // pred_fallthru
      _
    // Predicated region
    $region26: #{tpu_custom_call.1} parent=1 // pred_check
      _
    $region27: #{tpu_custom_call.1} parent=1 // pred_check_branch
      %83 = sbr.rel (0) target = $region29
    $region28: #{tpu_custom_call.1} parent=1 // pred_region
      _
    $region29: #{tpu_custom_call.1} parent=1 // pred_fallthru
      _
    // Predicated region
    $region30: #{tpu_custom_call.1} parent=1 // pred_check
      _
    $region31: #{tpu_custom_call.1} parent=1 // pred_check_branch
      %85 = sbr.rel (0) target = $region33
    $region32: #{tpu_custom_call.1} parent=1 // pred_region
      %87 = vsyncadd [#allocation12], 0
      %s88 = sshll.u32 %s7, 4
      %s89 = int_to_ptr.hbm [resolvable:$true] %s88
      %s90 = sshll.u32 [#allocation11], 4
      %s91 = int_to_ptr.vmem [resolvable:$true] %s90
      %96 = dma.hbm_to_vmem [thread:$0]  %s89, 4096, %s91, [#allocation12], 128, 128, 8
    $region33: #{tpu_custom_call.1} parent=1 // pred_fallthru
      _
    // Predicated region
    $region34: #{tpu_custom_call.1} parent=1 // pred_check
      _
    $region35: #{tpu_custom_call.1} parent=1 // pred_check_branch
      %98 = sbr.rel (0) target = $region37
    $region36: #{tpu_custom_call.1} parent=1 // pred_region
      _
    $region37: #{tpu_custom_call.1} parent=1 // pred_fallthru
      _
    // Predicated region
    $region38: #{tpu_custom_call.1} parent=1 // pred_check
      _
    $region39: #{tpu_custom_call.1} parent=1 // pred_check_branch
      %100 = sbr.rel (0) target = $region41
    $region40: #{tpu_custom_call.1} parent=1 // pred_region
      %102 = dma.done [#allocation3], 128
    $region41: #{tpu_custom_call.1} parent=1 // pred_fallthru
      _
    // Predicated region
    $region42: #{tpu_custom_call.1} parent=1 // pred_check
      _
    $region43: #{tpu_custom_call.1} parent=1 // pred_check_branch
      %104 = sbr.rel (0) target = $region45
    $region44: #{tpu_custom_call.1} parent=1 // pred_region
      %106 = dma.done [#allocation6], 512
    $region45: #{tpu_custom_call.1} parent=1 // pred_fallthru
      _
    // Predicated region
    $region46: #{tpu_custom_call.1} parent=1 // pred_check
      _
    $region47: #{tpu_custom_call.1} parent=1 // pred_check_branch
      %108 = sbr.rel (0) target = $region49
    $region48: #{tpu_custom_call.1} parent=1 // pred_region
      %110 = dma.done [#allocation6], 32
    $region49: #{tpu_custom_call.1} parent=1 // pred_fallthru
      _
    // Predicated region
    $region50: #{tpu_custom_call.1} parent=1 // pred_check
      _
    $region51: #{tpu_custom_call.1} parent=1 // pred_check_branch
      %112 = sbr.rel (0) target = $region53
    $region52: #{tpu_custom_call.1} parent=1 // pred_region
      %114 = dma.done [#allocation9], 8192
    $region53: #{tpu_custom_call.1} parent=1 // pred_fallthru
      _
    // Predicated region
    $region54: #{tpu_custom_call.1} parent=1 // pred_check
      _
    $region55: #{tpu_custom_call.1} parent=1 // pred_check_branch
      %116 = sbr.rel (0) target = $region57
    $region56: #{tpu_custom_call.1} parent=1 // pred_region
      %118 = dma.done [#allocation9], 8192
    $region57: #{tpu_custom_call.1} parent=1 // pred_fallthru
      _
    // Predicated region
    $region58: #{tpu_custom_call.1} parent=1 // pred_check
      _
    $region59: #{tpu_custom_call.1} parent=1 // pred_check_branch
      %120 = sbr.rel (0) target = $region61
    $region60: #{tpu_custom_call.1} parent=1 // pred_region
      %122 = dma.done [#allocation12], 4096
    $region61: #{tpu_custom_call.1} parent=1 // pred_fallthru
      _
    %v123 = vld [vmem:[#allocation2] sm:$0xff]
    %v124 = vld [vmem:[#allocation5] sm:$0xff]
    %v125 = vld [vmem:[#allocation5 + $0x8] sm:$0xff]
    %v126 = vld [vmem:[#allocation5 + $0x10] sm:$0xff]
    %v127 = vld [vmem:[#allocation5 + $0x18] sm:$0xff]
    %v128 = vld [vmem:[#allocation7] sm:$0x3]
    %v130 = vperm.slane %v128, 0
    %v131 = vperm.slane %v128, 1
    %vm134 = vcmask 130048
    %v136 = vsel %vm134, %v123, 0
    %138 = vmatpush.msra.mxu0 0.0
    %139 = vmatpush.msra.mxu0 0.0
    %140 = vmatpush.msra.mxu0 0.0
    %141 = vmatpush.msra.mxu0 0.0
    %142 = vmatpush.msra.mxu0 0.0
    %143 = vmatpush.msra.mxu0 0.0
    %144 = vmatpush.msra.mxu0 0.0
    %145 = vmatpush.msra.mxu0 0.0
    %146 = vmatpush.msra.mxu0 0.0
    %147 = vmatpush.msra.mxu0 0.0
    %148 = vmatpush.msra.mxu0 0.0
    %149 = vmatpush.msra.mxu0 0.0
    %150 = vmatpush.msra.mxu0 0.0
    %151 = vmatpush.msra.mxu0 0.0
    %152 = vmatpush.msra.mxu0 %v126
    %153 = vmatpush.msra.mxu0 %v124
    %154 = vmatmul.f32.gmra.mxu0 %v136
    %v155 = vpop.f32.mrf.mxu0
    %v156 = vadd.f32 %v130, %v155
    %157 = vdwg.mxu0
    %158 = vmatpush.msra.mxu0 0.0
    %159 = vmatpush.msra.mxu0 0.0
    %160 = vmatpush.msra.mxu0 0.0
    %161 = vmatpush.msra.mxu0 0.0
    %162 = vmatpush.msra.mxu0 0.0
    %163 = vmatpush.msra.mxu0 0.0
    %164 = vmatpush.msra.mxu0 0.0
    %165 = vmatpush.msra.mxu0 0.0
    %166 = vmatpush.msra.mxu0 0.0
    %167 = vmatpush.msra.mxu0 0.0
    %168 = vmatpush.msra.mxu0 0.0
    %169 = vmatpush.msra.mxu0 0.0
    %170 = vmatpush.msra.mxu0 0.0
    %171 = vmatpush.msra.mxu0 0.0
    %172 = vmatpush.msra.mxu0 %v127
    %173 = vmatpush.msra.mxu0 %v125
    %174 = vmatmul.f32.gmra.mxu0 %v136
    %v175 = vpop.f32.mrf.mxu0
    %v176 = vadd.f32 %v131, %v175
    %177 = vdwg.mxu0
    %v178 = vmax.f32 %v156, 0.0
    %v179 = vmax.f32 %v176, 0.0
    %v180 = vld [vmem:[#allocation8] sm:$0xff]
    %v181 = vld [vmem:[#allocation8 + $0x8] sm:$0xff]
    %v182 = vld [vmem:[#allocation8 + $0x10] sm:$0xff]
    %v183 = vld [vmem:[#allocation8 + $0x18] sm:$0xff]
    %v184 = vld [vmem:[#allocation8 + $0x20] sm:$0xff]
    %v185 = vld [vmem:[#allocation8 + $0x28] sm:$0xff]
    %v186 = vld [vmem:[#allocation8 + $0x30] sm:$0xff]
    %v187 = vld [vmem:[#allocation8 + $0x38] sm:$0xff]
    %v188 = vld [vmem:[#allocation8 + $0x40] sm:$0xff]
    %v189 = vld [vmem:[#allocation8 + $0x48] sm:$0xff]
    %v190 = vld [vmem:[#allocation8 + $0x50] sm:$0xff]
    %v191 = vld [vmem:[#allocation8 + $0x58] sm:$0xff]
    %v192 = vld [vmem:[#allocation8 + $0x60] sm:$0xff]
    %v193 = vld [vmem:[#allocation8 + $0x68] sm:$0xff]
    %v194 = vld [vmem:[#allocation8 + $0x70] sm:$0xff]
    %v195 = vld [vmem:[#allocation8 + $0x78] sm:$0xff]
    %v196 = vld [vmem:[#allocation8 + $0x80] sm:$0xff]
    %v197 = vld [vmem:[#allocation8 + $0x88] sm:$0xff]
    %v198 = vld [vmem:[#allocation8 + $0x90] sm:$0xff]
    %v199 = vld [vmem:[#allocation8 + $0x98] sm:$0xff]
    %v200 = vld [vmem:[#allocation8 + $0xa0] sm:$0xff]
    %v201 = vld [vmem:[#allocation8 + $0xa8] sm:$0xff]
    %v202 = vld [vmem:[#allocation8 + $0xb0] sm:$0xff]
    %v203 = vld [vmem:[#allocation8 + $0xb8] sm:$0xff]
    %v204 = vld [vmem:[#allocation8 + $0xc0] sm:$0xff]
    %v205 = vld [vmem:[#allocation8 + $0xc8] sm:$0xff]
    %v206 = vld [vmem:[#allocation8 + $0xd0] sm:$0xff]
    %v207 = vld [vmem:[#allocation8 + $0xd8] sm:$0xff]
    %v208 = vld [vmem:[#allocation8 + $0xe0] sm:$0xff]
    %v209 = vld [vmem:[#allocation8 + $0xe8] sm:$0xff]
    %v210 = vld [vmem:[#allocation8 + $0xf0] sm:$0xff]
    %v211 = vld [vmem:[#allocation8 + $0xf8] sm:$0xff]
    %v212 = vld [vmem:[#allocation8 + $0x100] sm:$0xff]
    %v213 = vld [vmem:[#allocation8 + $0x108] sm:$0xff]
    %v214 = vld [vmem:[#allocation8 + $0x110] sm:$0xff]
    %v215 = vld [vmem:[#allocation8 + $0x118] sm:$0xff]
    %v216 = vld [vmem:[#allocation8 + $0x120] sm:$0xff]
    %v217 = vld [vmem:[#allocation8 + $0x128] sm:$0xff]
    %v218 = vld [vmem:[#allocation8 + $0x130] sm:$0xff]
    %v219 = vld [vmem:[#allocation8 + $0x138] sm:$0xff]
    %v220 = vld [vmem:[#allocation8 + $0x140] sm:$0xff]
    %v221 = vld [vmem:[#allocation8 + $0x148] sm:$0xff]
    %v222 = vld [vmem:[#allocation8 + $0x150] sm:$0xff]
    %v223 = vld [vmem:[#allocation8 + $0x158] sm:$0xff]
    %v224 = vld [vmem:[#allocation8 + $0x160] sm:$0xff]
    %v225 = vld [vmem:[#allocation8 + $0x168] sm:$0xff]
    %v226 = vld [vmem:[#allocation8 + $0x170] sm:$0xff]
    %v227 = vld [vmem:[#allocation8 + $0x178] sm:$0xff]
    %v228 = vld [vmem:[#allocation8 + $0x180] sm:$0xff]
    %v229 = vld [vmem:[#allocation8 + $0x188] sm:$0xff]
    %v230 = vld [vmem:[#allocation8 + $0x190] sm:$0xff]
    %v231 = vld [vmem:[#allocation8 + $0x198] sm:$0xff]
    %v232 = vld [vmem:[#allocation8 + $0x1a0] sm:$0xff]
    %v233 = vld [vmem:[#allocation8 + $0x1a8] sm:$0xff]
    %v234 = vld [vmem:[#allocation8 + $0x1b0] sm:$0xff]
    %v235 = vld [vmem:[#allocation8 + $0x1b8] sm:$0xff]
    %v236 = vld [vmem:[#allocation8 + $0x1c0] sm:$0xff]
    %v237 = vld [vmem:[#allocation8 + $0x1c8] sm:$0xff]
    %v238 = vld [vmem:[#allocation8 + $0x1d0] sm:$0xff]
    %v239 = vld [vmem:[#allocation8 + $0x1d8] sm:$0xff]
    %v240 = vld [vmem:[#allocation8 + $0x1e0] sm:$0xff]
    %v241 = vld [vmem:[#allocation8 + $0x1e8] sm:$0xff]
    %v242 = vld [vmem:[#allocation8 + $0x1f0] sm:$0xff]
    %v243 = vld [vmem:[#allocation8 + $0x1f8] sm:$0xff]
    %v244 = vld [vmem:[%s4] sm:$0x3]
    %v246 = vperm.slane %v244, 0
    %v247 = vperm.slane %v244, 1
    %250 = vmatpush.msra.mxu0 %v210
    %251 = vmatpush.msra.mxu0 %v208
    %252 = vmatpush.msra.mxu0 %v206
    %253 = vmatpush.msra.mxu0 %v204
    %254 = vmatpush.msra.mxu0 %v202
    %255 = vmatpush.msra.mxu0 %v200
    %256 = vmatpush.msra.mxu0 %v198
    %257 = vmatpush.msra.mxu0 %v196
    %258 = vmatpush.msra.mxu0 %v194
    %259 = vmatpush.msra.mxu0 %v192
    %260 = vmatpush.msra.mxu0 %v190
    %261 = vmatpush.msra.mxu0 %v188
    %262 = vmatpush.msra.mxu0 %v186
    %263 = vmatpush.msra.mxu0 %v184
    %264 = vmatpush.msra.mxu0 %v182
    %265 = vmatpush.msra.mxu0 %v180
    %266 = vmatmul.f32.gmra.mxu0 %v178
    %v267 = vpop.f32.mrf.mxu0
    %v268 = vadd.f32 %v246, %v267
    %269 = vdwg.mxu0
    %270 = vmatpush.msra.mxu0 %v242
    %271 = vmatpush.msra.mxu0 %v240
    %272 = vmatpush.msra.mxu0 %v238
    %273 = vmatpush.msra.mxu0 %v236
    %274 = vmatpush.msra.mxu0 %v234
    %275 = vmatpush.msra.mxu0 %v232
    %276 = vmatpush.msra.mxu0 %v230
    %277 = vmatpush.msra.mxu0 %v228
    %278 = vmatpush.msra.mxu0 %v226
    %279 = vmatpush.msra.mxu0 %v224
    %280 = vmatpush.msra.mxu0 %v222
    %281 = vmatpush.msra.mxu0 %v220
    %282 = vmatpush.msra.mxu0 %v218
    %283 = vmatpush.msra.mxu0 %v216
    %284 = vmatpush.msra.mxu0 %v214
    %285 = vmatpush.msra.mxu0 %v212
    %286 = vmatmul.f32.gmra.mxu0 %v179
    %v287 = vpop.f32.mrf.mxu0
    %v288 = vadd.f32 %v268, %v287
    %289 = vdwg.mxu0
    %290 = vmatpush.msra.mxu0 %v211
    %291 = vmatpush.msra.mxu0 %v209
    %292 = vmatpush.msra.mxu0 %v207
    %293 = vmatpush.msra.mxu0 %v205
    %294 = vmatpush.msra.mxu0 %v203
    %295 = vmatpush.msra.mxu0 %v201
    %296 = vmatpush.msra.mxu0 %v199
    %297 = vmatpush.msra.mxu0 %v197
    %298 = vmatpush.msra.mxu0 %v195
    %299 = vmatpush.msra.mxu0 %v193
    %300 = vmatpush.msra.mxu0 %v191
    %301 = vmatpush.msra.mxu0 %v189
    %302 = vmatpush.msra.mxu0 %v187
    %303 = vmatpush.msra.mxu0 %v185
    %304 = vmatpush.msra.mxu0 %v183
    %305 = vmatpush.msra.mxu0 %v181
    %306 = vmatmul.f32.gmra.mxu0 %v178
    %v307 = vpop.f32.mrf.mxu0
    %v308 = vadd.f32 %v247, %v307
    %309 = vdwg.mxu0
    %310 = vmatpush.msra.mxu0 %v243
    %311 = vmatpush.msra.mxu0 %v241
    %312 = vmatpush.msra.mxu0 %v239
    %313 = vmatpush.msra.mxu0 %v237
    %314 = vmatpush.msra.mxu0 %v235
    %315 = vmatpush.msra.mxu0 %v233
    %316 = vmatpush.msra.mxu0 %v231
    %317 = vmatpush.msra.mxu0 %v229
    %318 = vmatpush.msra.mxu0 %v227
    %319 = vmatpush.msra.mxu0 %v225
    %320 = vmatpush.msra.mxu0 %v223
    %321 = vmatpush.msra.mxu0 %v221
    %322 = vmatpush.msra.mxu0 %v219
    %323 = vmatpush.msra.mxu0 %v217
    %324 = vmatpush.msra.mxu0 %v215
    %325 = vmatpush.msra.mxu0 %v213
    %326 = vmatmul.f32.gmra.mxu0 %v179
    %v327 = vpop.f32.mrf.mxu0
    %v328 = vadd.f32 %v308, %v327
    %329 = vdwg.mxu0
    %v330 = vmax.f32 %v288, 0.0
    %v331 = vmax.f32 %v328, 0.0
    %v332 = vld [vmem:[#allocation10] sm:$0xff]
    %v333 = vld [vmem:[#allocation10 + $0x8] sm:$0xff]
    %v334 = vld [vmem:[#allocation10 + $0x10] sm:$0xff]
    %v335 = vld [vmem:[#allocation10 + $0x18] sm:$0xff]
    %v336 = vld [vmem:[#allocation10 + $0x20] sm:$0xff]
    %v337 = vld [vmem:[#allocation10 + $0x28] sm:$0xff]
    %v338 = vld [vmem:[#allocation10 + $0x30] sm:$0xff]
    %v339 = vld [vmem:[#allocation10 + $0x38] sm:$0xff]
    %v340 = vld [vmem:[#allocation10 + $0x40] sm:$0xff]
    %v341 = vld [vmem:[#allocation10 + $0x48] sm:$0xff]
    %v342 = vld [vmem:[#allocation10 + $0x50] sm:$0xff]
    %v343 = vld [vmem:[#allocation10 + $0x58] sm:$0xff]
    %v344 = vld [vmem:[#allocation10 + $0x60] sm:$0xff]
    %v345 = vld [vmem:[#allocation10 + $0x68] sm:$0xff]
    %v346 = vld [vmem:[#allocation10 + $0x70] sm:$0xff]
    %v347 = vld [vmem:[#allocation10 + $0x78] sm:$0xff]
    %v348 = vld [vmem:[#allocation10 + $0x80] sm:$0xff]
    %v349 = vld [vmem:[#allocation10 + $0x88] sm:$0xff]
    %v350 = vld [vmem:[#allocation10 + $0x90] sm:$0xff]
    %v351 = vld [vmem:[#allocation10 + $0x98] sm:$0xff]
    %v352 = vld [vmem:[#allocation10 + $0xa0] sm:$0xff]
    %v353 = vld [vmem:[#allocation10 + $0xa8] sm:$0xff]
    %v354 = vld [vmem:[#allocation10 + $0xb0] sm:$0xff]
    %v355 = vld [vmem:[#allocation10 + $0xb8] sm:$0xff]
    %v356 = vld [vmem:[#allocation10 + $0xc0] sm:$0xff]
    %v357 = vld [vmem:[#allocation10 + $0xc8] sm:$0xff]
    %v358 = vld [vmem:[#allocation10 + $0xd0] sm:$0xff]
    %v359 = vld [vmem:[#allocation10 + $0xd8] sm:$0xff]
    %v360 = vld [vmem:[#allocation10 + $0xe0] sm:$0xff]
    %v361 = vld [vmem:[#allocation10 + $0xe8] sm:$0xff]
    %v362 = vld [vmem:[#allocation10 + $0xf0] sm:$0xff]
    %v363 = vld [vmem:[#allocation10 + $0xf8] sm:$0xff]
    %v364 = vld [vmem:[#allocation10 + $0x100] sm:$0xff]
    %v365 = vld [vmem:[#allocation10 + $0x108] sm:$0xff]
    %v366 = vld [vmem:[#allocation10 + $0x110] sm:$0xff]
    %v367 = vld [vmem:[#allocation10 + $0x118] sm:$0xff]
    %v368 = vld [vmem:[#allocation10 + $0x120] sm:$0xff]
    %v369 = vld [vmem:[#allocation10 + $0x128] sm:$0xff]
    %v370 = vld [vmem:[#allocation10 + $0x130] sm:$0xff]
    %v371 = vld [vmem:[#allocation10 + $0x138] sm:$0xff]
    %v372 = vld [vmem:[#allocation10 + $0x140] sm:$0xff]
    %v373 = vld [vmem:[#allocation10 + $0x148] sm:$0xff]
    %v374 = vld [vmem:[#allocation10 + $0x150] sm:$0xff]
    %v375 = vld [vmem:[#allocation10 + $0x158] sm:$0xff]
    %v376 = vld [vmem:[#allocation10 + $0x160] sm:$0xff]
    %v377 = vld [vmem:[#allocation10 + $0x168] sm:$0xff]
    %v378 = vld [vmem:[#allocation10 + $0x170] sm:$0xff]
    %v379 = vld [vmem:[#allocation10 + $0x178] sm:$0xff]
    %v380 = vld [vmem:[#allocation10 + $0x180] sm:$0xff]
    %v381 = vld [vmem:[#allocation10 + $0x188] sm:$0xff]
    %v382 = vld [vmem:[#allocation10 + $0x190] sm:$0xff]
    %v383 = vld [vmem:[#allocation10 + $0x198] sm:$0xff]
    %v384 = vld [vmem:[#allocation10 + $0x1a0] sm:$0xff]
    %v385 = vld [vmem:[#allocation10 + $0x1a8] sm:$0xff]
    %v386 = vld [vmem:[#allocation10 + $0x1b0] sm:$0xff]
    %v387 = vld [vmem:[#allocation10 + $0x1b8] sm:$0xff]
    %v388 = vld [vmem:[#allocation10 + $0x1c0] sm:$0xff]
    %v389 = vld [vmem:[#allocation10 + $0x1c8] sm:$0xff]
    %v390 = vld [vmem:[#allocation10 + $0x1d0] sm:$0xff]
    %v391 = vld [vmem:[#allocation10 + $0x1d8] sm:$0xff]
    %v392 = vld [vmem:[#allocation10 + $0x1e0] sm:$0xff]
    %v393 = vld [vmem:[#allocation10 + $0x1e8] sm:$0xff]
    %v394 = vld [vmem:[#allocation10 + $0x1f0] sm:$0xff]
    %v395 = vld [vmem:[#allocation10 + $0x1f8] sm:$0xff]
    %v396 = vld [vmem:[%s6] sm:$0x3]
    %v398 = vperm.slane %v396, 0
    %v399 = vperm.slane %v396, 1
    %402 = vmatpush.msra.mxu0 %v362
    %403 = vmatpush.msra.mxu0 %v360
    %404 = vmatpush.msra.mxu0 %v358
    %405 = vmatpush.msra.mxu0 %v356
    %406 = vmatpush.msra.mxu0 %v354
    %407 = vmatpush.msra.mxu0 %v352
    %408 = vmatpush.msra.mxu0 %v350
    %409 = vmatpush.msra.mxu0 %v348
    %410 = vmatpush.msra.mxu0 %v346
    %411 = vmatpush.msra.mxu0 %v344
    %412 = vmatpush.msra.mxu0 %v342
    %413 = vmatpush.msra.mxu0 %v340
    %414 = vmatpush.msra.mxu0 %v338
    %415 = vmatpush.msra.mxu0 %v336
    %416 = vmatpush.msra.mxu0 %v334
    %417 = vmatpush.msra.mxu0 %v332
    %418 = vmatmul.f32.gmra.mxu0 %v330
    %v419 = vpop.f32.mrf.mxu0
    %v420 = vadd.f32 %v398, %v419
    %421 = vdwg.mxu0
    %422 = vmatpush.msra.mxu0 %v394
    %423 = vmatpush.msra.mxu0 %v392
    %424 = vmatpush.msra.mxu0 %v390
    %425 = vmatpush.msra.mxu0 %v388
    %426 = vmatpush.msra.mxu0 %v386
    %427 = vmatpush.msra.mxu0 %v384
    %428 = vmatpush.msra.mxu0 %v382
    %429 = vmatpush.msra.mxu0 %v380
    %430 = vmatpush.msra.mxu0 %v378
    %431 = vmatpush.msra.mxu0 %v376
    %432 = vmatpush.msra.mxu0 %v374
    %433 = vmatpush.msra.mxu0 %v372
    %434 = vmatpush.msra.mxu0 %v370
    %435 = vmatpush.msra.mxu0 %v368
    %436 = vmatpush.msra.mxu0 %v366
    %437 = vmatpush.msra.mxu0 %v364
    %438 = vmatmul.f32.gmra.mxu0 %v331
    %v439 = vpop.f32.mrf.mxu0
    %v440 = vadd.f32 %v420, %v439
    %441 = vdwg.mxu0
    %442 = vmatpush.msra.mxu0 %v363
    %443 = vmatpush.msra.mxu0 %v361
    %444 = vmatpush.msra.mxu0 %v359
    %445 = vmatpush.msra.mxu0 %v357
    %446 = vmatpush.msra.mxu0 %v355
    %447 = vmatpush.msra.mxu0 %v353
    %448 = vmatpush.msra.mxu0 %v351
    %449 = vmatpush.msra.mxu0 %v349
    %450 = vmatpush.msra.mxu0 %v347
    %451 = vmatpush.msra.mxu0 %v345
    %452 = vmatpush.msra.mxu0 %v343
    %453 = vmatpush.msra.mxu0 %v341
    %454 = vmatpush.msra.mxu0 %v339
    %455 = vmatpush.msra.mxu0 %v337
    %456 = vmatpush.msra.mxu0 %v335
    %457 = vmatpush.msra.mxu0 %v333
    %458 = vmatmul.f32.gmra.mxu0 %v330
    %v459 = vpop.f32.mrf.mxu0
    %v460 = vadd.f32 %v399, %v459
    %461 = vdwg.mxu0
    %462 = vmatpush.msra.mxu0 %v395
    %463 = vmatpush.msra.mxu0 %v393
    %464 = vmatpush.msra.mxu0 %v391
    %465 = vmatpush.msra.mxu0 %v389
    %466 = vmatpush.msra.mxu0 %v387
    %467 = vmatpush.msra.mxu0 %v385
    %468 = vmatpush.msra.mxu0 %v383
    %469 = vmatpush.msra.mxu0 %v381
    %470 = vmatpush.msra.mxu0 %v379
    %471 = vmatpush.msra.mxu0 %v377
    %472 = vmatpush.msra.mxu0 %v375
    %473 = vmatpush.msra.mxu0 %v373
    %474 = vmatpush.msra.mxu0 %v371
    %475 = vmatpush.msra.mxu0 %v369
    %476 = vmatpush.msra.mxu0 %v367
    %477 = vmatpush.msra.mxu0 %v365
    %478 = vmatmul.f32.gmra.mxu0 %v331
    %v479 = vpop.f32.mrf.mxu0
    %v480 = vadd.f32 %v460, %v479
    %481 = vdwg.mxu0
    %v482 = vmax.f32 %v440, 0.0
    %v483 = vmax.f32 %v480, 0.0
    %v484 = vld [vmem:[#allocation11] sm:$0xff]
    %v485 = vld [vmem:[#allocation11 + $0x8] sm:$0xff]
    %v486 = vld [vmem:[#allocation11 + $0x10] sm:$0xff]
    %v487 = vld [vmem:[#allocation11 + $0x18] sm:$0xff]
    %v488 = vld [vmem:[#allocation11 + $0x20] sm:$0xff]
    %v489 = vld [vmem:[#allocation11 + $0x28] sm:$0xff]
    %v490 = vld [vmem:[#allocation11 + $0x30] sm:$0xff]
    %v491 = vld [vmem:[#allocation11 + $0x38] sm:$0xff]
    %v492 = vld [vmem:[#allocation11 + $0x40] sm:$0xff]
    %v493 = vld [vmem:[#allocation11 + $0x48] sm:$0xff]
    %v494 = vld [vmem:[#allocation11 + $0x50] sm:$0xff]
    %v495 = vld [vmem:[#allocation11 + $0x58] sm:$0xff]
    %v496 = vld [vmem:[#allocation11 + $0x60] sm:$0xff]
    %v497 = vld [vmem:[#allocation11 + $0x68] sm:$0xff]
    %v498 = vld [vmem:[#allocation11 + $0x70] sm:$0xff]
    %v499 = vld [vmem:[#allocation11 + $0x78] sm:$0xff]
    %v500 = vld [vmem:[#allocation11 + $0x80] sm:$0xff]
    %v501 = vld [vmem:[#allocation11 + $0x88] sm:$0xff]
    %v502 = vld [vmem:[#allocation11 + $0x90] sm:$0xff]
    %v503 = vld [vmem:[#allocation11 + $0x98] sm:$0xff]
    %v504 = vld [vmem:[#allocation11 + $0xa0] sm:$0xff]
    %v505 = vld [vmem:[#allocation11 + $0xa8] sm:$0xff]
    %v506 = vld [vmem:[#allocation11 + $0xb0] sm:$0xff]
    %v507 = vld [vmem:[#allocation11 + $0xb8] sm:$0xff]
    %v508 = vld [vmem:[#allocation11 + $0xc0] sm:$0xff]
    %v509 = vld [vmem:[#allocation11 + $0xc8] sm:$0xff]
    %v510 = vld [vmem:[#allocation11 + $0xd0] sm:$0xff]
    %v511 = vld [vmem:[#allocation11 + $0xd8] sm:$0xff]
    %v512 = vld [vmem:[#allocation11 + $0xe0] sm:$0xff]
    %v513 = vld [vmem:[#allocation11 + $0xe8] sm:$0xff]
    %v514 = vld [vmem:[#allocation11 + $0xf0] sm:$0xff]
    %v515 = vld [vmem:[#allocation11 + $0xf8] sm:$0xff]
    %v516 = vld [vmem:[%s8] sm:$0x1]
    %v518 = vperm.slane %v516, 0
    %520 = vmatpush.msra.mxu0 %v499
    %521 = vmatpush.msra.mxu0 %v498
    %522 = vmatpush.msra.mxu0 %v497
    %523 = vmatpush.msra.mxu0 %v496
    %524 = vmatpush.msra.mxu0 %v495
    %525 = vmatpush.msra.mxu0 %v494
    %526 = vmatpush.msra.mxu0 %v493
    %527 = vmatpush.msra.mxu0 %v492
    %528 = vmatpush.msra.mxu0 %v491
    %529 = vmatpush.msra.mxu0 %v490
    %530 = vmatpush.msra.mxu0 %v489
    %531 = vmatpush.msra.mxu0 %v488
    %532 = vmatpush.msra.mxu0 %v487
    %533 = vmatpush.msra.mxu0 %v486
    %534 = vmatpush.msra.mxu0 %v485
    %535 = vmatpush.msra.mxu0 %v484
    %536 = vmatmul.f32.gmra.mxu0 %v482
    %v537 = vpop.f32.mrf.mxu0
    %v538 = vadd.f32 %v518, %v537
    %539 = vdwg.mxu0
    %540 = vmatpush.msra.mxu0 %v515
    %541 = vmatpush.msra.mxu0 %v514
    %542 = vmatpush.msra.mxu0 %v513
    %543 = vmatpush.msra.mxu0 %v512
    %544 = vmatpush.msra.mxu0 %v511
    %545 = vmatpush.msra.mxu0 %v510
    %546 = vmatpush.msra.mxu0 %v509
    %547 = vmatpush.msra.mxu0 %v508
    %548 = vmatpush.msra.mxu0 %v507
    %549 = vmatpush.msra.mxu0 %v506
    %550 = vmatpush.msra.mxu0 %v505
    %551 = vmatpush.msra.mxu0 %v504
    %552 = vmatpush.msra.mxu0 %v503
    %553 = vmatpush.msra.mxu0 %v502
    %554 = vmatpush.msra.mxu0 %v501
    %555 = vmatpush.msra.mxu0 %v500
    %556 = vmatmul.f32.gmra.mxu0 %v483
    %v557 = vpop.f32.mrf.mxu0
    %v558 = vadd.f32 %v538, %v557
    %559 = vdwg.mxu0
    %560 = vst [vmem:[#allocation13] sm:$0xff] %v558
    // Predicated region
    $region62: #{tpu_custom_call.1} parent=1 // pred_check
      _
    $region63: #{tpu_custom_call.1} parent=1 // pred_check_branch
      %562 = sbr.rel (0) target = $region65
    $region64: #{tpu_custom_call.1} parent=1 // pred_region
      %564 = vsyncadd [#allocation4], 0
      %s566 = sshll.u32 [#allocation13], 4
      %s567 = int_to_ptr.vmem [resolvable:$true] %s566
      %s568 = sshll.u32 %s9, 4
      %s569 = int_to_ptr.hbm [resolvable:$true] %s568
      %571 = dma.vmem_to_hbm [thread:$0]  %s567, 128, %s569, [#allocation4]
    $region65: #{tpu_custom_call.1} parent=1 // pred_fallthru
      _
    // Predicated region
    $region66: #{tpu_custom_call.1} parent=1 // pred_check
      _
    $region67: #{tpu_custom_call.1} parent=1 // pred_check_branch
      %573 = sbr.rel (0) target = $region69
    $region68: #{tpu_custom_call.1} parent=1 // pred_region
      %575 = dma.done [#allocation4], 128
    $region69: #{tpu_custom_call.1} parent=1 // pred_fallthru
      _
    %576 = vsyncpa [#allocation3], 1
    %577 = vsyncpa [#allocation6], 1
    %578 = vsyncpa [#allocation9], 1
    %579 = vsyncpa [#allocation12], 1
    %580 = vsyncpa [#allocation4], 1

</llo_original>
